<compile_context>
chip_gen: v5e
topology: v5e:2x2
jax: 0.10.0
libtpu: 0.0.40
codegen_flags: <defaults>
</compile_context>

<pallas_src>
import functools

import jax
import jax.numpy as jnp
from jax.experimental import pallas as pl
from jax.experimental.pallas import tpu as pltpu


def _bitparm_kernel(x_ref, sph_ref, b_ref, ta_ref, o_ref):
    # x_ref/o_ref: (T_R, T_HW); params: (T_R, 1) broadcast across lanes.
    y = x_ref[...] * sph_ref[...] + b_ref[...]
    o_ref[...] = y + jnp.tanh(y) * ta_ref[...]


def _bitparm_final_kernel(x_ref, sph_ref, b_ref, o_ref):
    y = x_ref[...] * sph_ref[...] + b_ref[...]
    # sigmoid(y) == 0.5 * tanh(0.5 * y) + 0.5 : a single EUP op + VPU FMA.
    o_ref[...] = 0.5 * jnp.tanh(0.5 * y) + 0.5


def _choose_tiles(R, HW, itemsize, target_bytes=4 << 20, min_programs=4):
    """Pick (T_R, T_HW) with T_R % 8 == 0 (or == R), T_HW % 128 == 0 (or == HW)."""
    # Lane (HW) tile.
    if HW <= 128:
        t_hw = HW                                    # full dim: always legal
    else:
        cap = max(128, min(target_bytes // (8 * itemsize), 16384))
        cap = (cap // 128) * 128
        t_hw = min((HW // 128) * 128, cap)           # ragged tail is masked

    # Row (sublane) tile sized so the x block is ~target_bytes.
    rows = max(1, target_bytes // (t_hw * itemsize))
    if rows >= R or R <= 8:
        t_r = R                                      # full dim: always legal
    else:
        t_r = max(8, (min(rows, R) // 8) * 8)

    # Megacore (v7x has 2 TCs): keep a few programs on the parallel axes as
    # long as blocks stay comfortably large; never shatter tiny inputs.
    def n_prog(tr, th):
        return pl.cdiv(R, tr) * pl.cdiv(HW, th)

    while n_prog(t_r, t_hw) < min_programs:
        if t_r * t_hw * itemsize < (1 << 20):
            break
        if t_r >= 16:
            t_r = max(8, ((t_r // 2) // 8) * 8)
        elif t_hw >= 256:
            t_hw = max(128, ((t_hw // 2) // 128) * 128)
        else:
            break
    return t_r, t_hw


@functools.partial(jax.jit, static_argnames=("final",))
def bitparm_pallas(x, h, b, a=None, *, final=False):
    """x: (N, C, H, W); h/b/a: (1, C, 1, 1)."""
    N, C, H, W = x.shape
    HW = H * W
    R = N * C
    itemsize = jnp.dtype(x.dtype).itemsize

    # Tiny per-channel terms, precomputed once (stable softplus) and broadcast
    # to one (R, 1) column per flattened row (a few KB, stays VMEM-resident).
    sp_h = jnp.broadcast_to(jax.nn.softplus(h).reshape(1, C), (N, C)).reshape(R, 1)
    b2 = jnp.broadcast_to(b.reshape(1, C), (N, C)).reshape(R, 1)

    x2 = x.reshape(R, HW)  # free: contiguous NCHW -> (N*C, H*W)

    t_r, t_hw = _choose_tiles(R, HW, itemsize)
    grid = (pl.cdiv(R, t_r), pl.cdiv(HW, t_hw))

    x_spec = pl.BlockSpec((t_r, t_hw), lambda r, s: (r, s))
    p_spec = pl.BlockSpec((t_r, 1), lambda r, s: (r, 0))
    out_spec = pl.BlockSpec((t_r, t_hw), lambda r, s: (r, s))

    if final:
        kernel = _bitparm_final_kernel
        operands = (x2, sp_h, b2)
        in_specs = [x_spec, p_spec, p_spec]
    else:
        assert a is not None, "non-final Bitparm requires parameter `a`"
        t_a = jnp.broadcast_to(jnp.tanh(a).reshape(1, C), (N, C)).reshape(R, 1)
        operands = (x2, sp_h, b2, t_a)
        kernel = _bitparm_kernel
        in_specs = [x_spec, p_spec, p_spec, p_spec]

    n_elem = x.size
    cost = pl.CostEstimate(
        flops=5 * n_elem,
        transcendentals=n_elem,
        bytes_accessed=2 * n_elem * itemsize,
    )

    out = pl.pallas_call(
        kernel,
        out_shape=jax.ShapeDtypeStruct((R, HW), x.dtype),
        grid_spec=pltpu.PrefetchScalarGridSpec(
            num_scalar_prefetch=0,
            grid=grid,
            in_specs=in_specs,
            out_specs=out_spec,
        ),
        compiler_params=pltpu.CompilerParams(
            dimension_semantics=("parallel", "parallel"),
            vmem_limit_bytes=32 << 20,
        ),
        cost_estimate=cost,
    )(*operands)

    return out.reshape(N, C, H, W)


def bitparm_ref(x, h, b, a=None, *, final=False):
    y = x * jax.nn.softplus(h) + b
    if final:
        return jax.nn.sigmoid(y)
    return y + jnp.tanh(y) * jnp.tanh(a)


if __name__ == "__main__":
    key = jax.random.PRNGKey(0)
    kx, kh, kb, ka = jax.random.split(key, 4)

    N, C, H, W = 2, 4, 16, 16
    x = jax.random.normal(kx, (N, C, H, W), dtype=jnp.float32)
    # Deterministic init mirroring torch.nn.init.normal_(..., 0, 0.01)
    h = 0.01 * jax.random.normal(kh, (1, C, 1, 1), dtype=jnp.float32)
    b = 0.01 * jax.random.normal(kb, (1, C, 1, 1), dtype=jnp.float32)
    a = 0.01 * jax.random.normal(ka, (1, C, 1, 1), dtype=jnp.float32)

    # non-final Bitparm
    out = bitparm_pallas(x, h, b, a, final=False)
    jax.block_until_ready(out)
    ref = bitparm_ref(x, h, b, a, final=False)
    assert jnp.allclose(out, ref, atol=1e-5, rtol=1e-5), "non-final mismatch"

    # final Bitparm
    out_f = bitparm_pallas(x, h, b, final=True)
    jax.block_until_ready(out_f)
    ref_f = bitparm_ref(x, h, b, final=True)
    assert jnp.allclose(out_f, ref_f, atol=1e-5, rtol=1e-5), "final mismatch"

    print("KERNEL_OK")
</pallas_src>

<mosaic_0001>
module attributes {stable_mosaic.version = 11 : i64} {
  func.func @_bitparm_kernel(%arg0: i32, %arg1: i32, %arg2: memref<8x256xf32, #tpu.memory_space<vmem>>, %arg3: memref<8x1xf32, #tpu.memory_space<vmem>>, %arg4: memref<8x1xf32, #tpu.memory_space<vmem>>, %arg5: memref<8x1xf32, #tpu.memory_space<vmem>>, %arg6: memref<8x256xf32, #tpu.memory_space<vmem>>) attributes {dimension_semantics = [#tpu.dimension_semantics<parallel>, #tpu.dimension_semantics<parallel>], iteration_bounds = array<i64: 1, 1>, scalar_prefetch = 0 : i64, scratch_operands = 0 : i64, tpu.core_type = #tpu.core_type<tc>, window_params = [{transform_indices = @transform_0, window_bounds = array<i64: 8, 256>}, {transform_indices = @transform_1, window_bounds = array<i64: 8, 1>}, {transform_indices = @transform_2, window_bounds = array<i64: 8, 1>}, {transform_indices = @transform_3, window_bounds = array<i64: 8, 1>}, {transform_indices = @transform_4, window_bounds = array<i64: 8, 256>}]} {
    %c0 = arith.constant 0 : index
    %c0_0 = arith.constant 0 : index
    %0 = vector.load %arg2[%c0, %c0_0] : memref<8x256xf32, #tpu.memory_space<vmem>>, vector<8x256xf32>
    %c0_1 = arith.constant 0 : index
    %c0_2 = arith.constant 0 : index
    %1 = vector.load %arg3[%c0_1, %c0_2] : memref<8x1xf32, #tpu.memory_space<vmem>>, vector<8x1xf32>
    %2 = vector.broadcast %1 : vector<8x1xf32> to vector<8x256xf32>
    %3 = arith.mulf %0, %2 : vector<8x256xf32>
    %c0_3 = arith.constant 0 : index
    %c0_4 = arith.constant 0 : index
    %4 = vector.load %arg4[%c0_3, %c0_4] : memref<8x1xf32, #tpu.memory_space<vmem>>, vector<8x1xf32>
    %5 = vector.broadcast %4 : vector<8x1xf32> to vector<8x256xf32>
    %6 = arith.addf %3, %5 : vector<8x256xf32>
    %7 = math.tanh %6 : vector<8x256xf32>
    %c0_5 = arith.constant 0 : index
    %c0_6 = arith.constant 0 : index
    %8 = vector.load %arg5[%c0_5, %c0_6] : memref<8x1xf32, #tpu.memory_space<vmem>>, vector<8x1xf32>
    %9 = vector.broadcast %8 : vector<8x1xf32> to vector<8x256xf32>
    %10 = arith.mulf %7, %9 : vector<8x256xf32>
    %11 = arith.addf %6, %10 : vector<8x256xf32>
    %c0_7 = arith.constant 0 : index
    %c0_8 = arith.constant 0 : index
    %12 = vector.load %arg6[%c0_7, %c0_8] : memref<8x256xf32, #tpu.memory_space<vmem>>, vector<8x256xf32>
    tpu.vector_store %arg6[%c0_7, %c0_8], %11 {strides = array<i32>} : memref<8x256xf32, #tpu.memory_space<vmem>>, vector<8x256xf32>,
    return
  }
  func.func @transform_0(%arg0: i32, %arg1: i32) -> (i32, i32) {
    %c0_i32 = arith.constant 0 : i32
    return %arg0, %arg1 : i32, i32
  }
  func.func @transform_1(%arg0: i32, %arg1: i32) -> (i32, i32) {
    %c0_i32 = arith.constant 0 : i32
    %c0_i32_0 = arith.constant 0 : i32
    return %arg0, %c0_i32 : i32, i32
  }
  func.func @transform_2(%arg0: i32, %arg1: i32) -> (i32, i32) {
    %c0_i32 = arith.constant 0 : i32
    %c0_i32_0 = arith.constant 0 : i32
    return %arg0, %c0_i32 : i32, i32
  }
  func.func @transform_3(%arg0: i32, %arg1: i32) -> (i32, i32) {
    %c0_i32 = arith.constant 0 : i32
    %c0_i32_0 = arith.constant 0 : i32
    return %arg0, %c0_i32 : i32, i32
  }
  func.func @transform_4(%arg0: i32, %arg1: i32) -> (i32, i32) {
    %c0_i32 = arith.constant 0 : i32
    return %arg0, %arg1 : i32, i32
  }
}

</mosaic_0001>

<llo_original>
// kernel: bitparm_pallas.1
$region0: #{bitparm_pallas.1}
  #allocation0 [shape = 'u32[]', space=smem, size = 0x4, offset = 0x4, fixed_abs, tag = 'smem constant byte address 0x4 - core index']
  #allocation1 [shape = 'u32[72,128]{1,0:T(1,128)}', space=vmem, size = 0x9000, scoped, tag = 'internal scratch']
  %s0 = inlined_call_operand.vmem [shape: f32[8,256], index: 0, kind: input, shape index: {}]
  %s1 = inlined_call_operand.vmem [shape: f32[8,1], index: 1, kind: input, shape index: {}]
  %s2 = inlined_call_operand.vmem [shape: f32[8,1], index: 2, kind: input, shape index: {}]
  %s3 = inlined_call_operand.vmem [shape: f32[8,1], index: 3, kind: input, shape index: {}]
  %s4 = inlined_call_operand.vmem [shape: f32[8,256], index: 4, kind: output, shape index: {}]
  %s5 = sld [smem:[#allocation0]]
  $region26: #{bitparm_pallas.1} parent=0
    _
  %s7 = ssub.s32 1, %s5
  %s8 = scalar_select 0, %s7, %s5
  // Predicated region
  $region2: #{bitparm_pallas.1} parent=0 // pred_check
    _
  $region3: #{bitparm_pallas.1} parent=0 // pred_check_branch
    %10 = sbr.rel (0) target = $region5
  $region4: #{bitparm_pallas.1} parent=0 // pred_region
    _
  $region5: #{bitparm_pallas.1} parent=0 // pred_fallthru
    _
  // Predicated region
  $region6: #{bitparm_pallas.1} parent=0 // pred_check
    _
  $region7: #{bitparm_pallas.1} parent=0 // pred_check_branch
    %12 = sbr.rel (0) target = $region9
  $region8: #{bitparm_pallas.1} parent=0 // pred_region
    _
  $region9: #{bitparm_pallas.1} parent=0 // pred_fallthru
    _
  // Predicated region
  $region10: #{bitparm_pallas.1} parent=0 // pred_check
    _
  $region11: #{bitparm_pallas.1} parent=0 // pred_check_branch
    %14 = sbr.rel (0) target = $region13
  $region12: #{bitparm_pallas.1} parent=0 // pred_region
    _
  $region13: #{bitparm_pallas.1} parent=0 // pred_fallthru
    _
  // Predicated region
  $region14: #{bitparm_pallas.1} parent=0 // pred_check
    _
  $region15: #{bitparm_pallas.1} parent=0 // pred_check_branch
    %16 = sbr.rel (0) target = $region17
  $region16: #{bitparm_pallas.1} parent=0 // pred_region
    _
  $region17: #{bitparm_pallas.1} parent=0 // pred_fallthru
    _
  %v17 = vld [vmem:[%s0] sm:$0xff]
  %v18 = vld [vmem:[%s0 + $0x8] sm:$0xff]
  %v19 = vld [vmem:[%s1] sm:$0xff]
  %21 = vset.pattern.permute.xlu0 0
  %22 = vperm.xlu0 %21, %v19
  %v23 = vpop.permute.xlu0 %22
  %v25 = vmul.f32 %v17, %v23
  %v26 = vmul.f32 %v18, %v23
  %v27 = vld [vmem:[%s2] sm:$0xff]
  %29 = vset.pattern.permute.xlu0 0
  %30 = vperm.xlu0 %29, %v27
  %v31 = vpop.permute.xlu0 %30
  %v33 = vadd.f32 %v25, %v31
  %v34 = vadd.f32 %v26, %v31
  %v35 = vtanh.pop %v33
  %v36 = vtanh.pop %v34
  %v37 = vld [vmem:[%s3] sm:$0xff]
  %39 = vset.pattern.permute.xlu0 0
  %40 = vperm.xlu0 %39, %v37
  %v41 = vpop.permute.xlu0 %40
  %v43 = vmul.f32 %v35, %v41
  %v44 = vmul.f32 %v36, %v41
  %v45 = vadd.f32 %v33, %v43
  %v46 = vadd.f32 %v34, %v44
  %47 = vst [vmem:[%s4] sm:$0xff] %v45
  %48 = vst [vmem:[%s4 + $0x8] sm:$0xff] %v46
  // Predicated region
  $region18: #{bitparm_pallas.1} parent=0 // pred_check
    _
  $region19: #{bitparm_pallas.1} parent=0 // pred_check_branch
    %50 = sbr.rel (0) target = $region21
  $region20: #{bitparm_pallas.1} parent=0 // pred_region
    _
  $region21: #{bitparm_pallas.1} parent=0 // pred_fallthru
    _
  // Predicated region
  $region22: #{bitparm_pallas.1} parent=0 // pred_check
    _
  $region23: #{bitparm_pallas.1} parent=0 // pred_check_branch
    %52 = sbr.rel (0) target = $region25
  $region24: #{bitparm_pallas.1} parent=0 // pred_region
    _
  $region25: #{bitparm_pallas.1} parent=0 // pred_fallthru
    _

</llo_original>
